<compile_context>
chip_gen: v6e
topology: v6e:2x2x1
jax: 0.10.0
libtpu: 0.0.40
codegen_flags: <defaults>
</compile_context>

<pallas_src>
import functools

import jax
import jax.numpy as jnp
from jax.experimental import pallas as pl
from jax.experimental.pallas import tpu as pltpu

LANE = 128
SUBLANE = 16  # bf16-friendly row granularity for batch tiles


def _round_up(n: int, m: int) -> int:
    return ((n + m - 1) // m) * m


def _mlp_kernel(x_ref, w1_ref, b1_ref, w2_ref, b2_ref, w3_ref, b3_ref,
                w4_ref, b4_ref, o_ref):
    """One batch tile of the full fused MLP forward pass."""
    # x arrives as f32 straight from HBM; cast to bf16 in-register for the MXU.
    x = x_ref[...].astype(jnp.bfloat16)

    h1 = jnp.dot(x, w1_ref[...], preferred_element_type=jnp.float32) + b1_ref[...]
    a1 = jnp.maximum(h1, 0.0).astype(jnp.bfloat16)

    h2 = jnp.dot(a1, w2_ref[...], preferred_element_type=jnp.float32) + b2_ref[...]
    a2 = jnp.maximum(h2, 0.0).astype(jnp.bfloat16)

    h3 = jnp.dot(a2, w3_ref[...], preferred_element_type=jnp.float32) + b3_ref[...]
    a3 = jnp.maximum(h3, 0.0).astype(jnp.bfloat16)

    # Padded class lanes of b4 already hold -1e30 (set once at prep time), so the
    # padded logits vanish in the softmax without any in-kernel iota/mask.
    logits = jnp.dot(a3, w4_ref[...], preferred_element_type=jnp.float32) + b4_ref[...]

    # Numerically stable softmax over dim=1; reciprocal goes to the EUP slot.
    m = jnp.max(logits, axis=1, keepdims=True)
    e = jnp.exp(logits - m)
    denom = jnp.sum(e, axis=1, keepdims=True)
    o_ref[...] = (e * pl.reciprocal(denom, approx=True)).astype(o_ref.dtype)


def prepare_params(ws, bs, n_classes=10):
    """One-time pad + bf16 cast of (in, out)-layout weights.

    Done once outside the forward path so no per-call HBM traffic is spent
    re-reading/re-writing the weights. Padded class lanes of b4 get -1e30 so the
    kernel needs no masking.
    """
    w1, w2, w3, w4 = ws
    b1, b2, b3, b4 = bs
    in_dim, hidden = w1.shape
    hid_pad = _round_up(hidden, LANE)
    cls_pad = _round_up(n_classes, LANE)

    def padw(w, r, c):
        return jnp.pad(w, ((0, r - w.shape[0]), (0, c - w.shape[1]))).astype(jnp.bfloat16)

    def padb(b, c, fill=0.0):
        return jnp.pad(b, ((0, 0), (0, c - b.shape[1])),
                       constant_values=fill).astype(jnp.float32)

    return dict(
        w1=padw(w1, in_dim, hid_pad), b1=padb(b1, hid_pad),
        w2=padw(w2, hid_pad, hid_pad), b2=padb(b2, hid_pad),
        w3=padw(w3, hid_pad, hid_pad), b3=padb(b3, hid_pad),
        w4=padw(w4, hid_pad, cls_pad), b4=padb(b4, cls_pad, fill=-1e30),
    )


def _pick_batch_tile(batch: int):
    """Batch tile so that (a) >=2 tiles whenever batch >= 32 (both v7x TCs busy),
    (b) large batches use 512-row tiles (near HBM roofline, amortizes per-step
    overhead), (c) tiles are multiples of 16."""
    batch_r = _round_up(batch, SUBLANE)
    if batch_r <= SUBLANE:
        tb = batch_r                                        # toy batch: one tile
    else:
        tb = min(512, _round_up((batch_r + 1) // 2, SUBLANE))
    batch_pad = _round_up(batch_r, tb)
    return tb, batch_pad, batch_pad // tb


@functools.partial(jax.jit, static_argnames=("n_classes", "out_dtype"))
def mlp_forward(x, params, *, n_classes=10, out_dtype=jnp.float32):
    """x: (batch, input_dim) f32.  params: output of prepare_params()."""
    batch, in_dim = x.shape
    hid_pad = params["w1"].shape[1]
    cls_pad = params["w4"].shape[1]

    tb, batch_pad, num_tiles = _pick_batch_tile(batch)

    # Only row-pad x (if needed); lanes stay at the true in_dim and dtype stays f32,
    # so there is no extra full pass over the input before the kernel.
    xp = x if batch_pad == batch else jnp.pad(x, ((0, batch_pad - batch), (0, 0)))

    # Grid-invariant operands: whole-array block, constant index_map, single buffer.
    def resident(a):
        return pl.BlockSpec(a.shape, lambda i: (0, 0), pipeline_mode=pl.Buffered(1))

    out_itemsize = jnp.dtype(out_dtype).itemsize
    w_elems = (in_dim * hid_pad + 2 * hid_pad * hid_pad + hid_pad * cls_pad)
    b_elems = 3 * hid_pad + cls_pad

    # VMEM budget: single-buffered weights + double-buffered x/out tiles + f32
    # intermediates, with headroom. Kept well under v7x's 64 MiB per-TC VMEM at
    # these sizes; grows with model_scale.
    vmem_need = (w_elems * 2 + b_elems * 4
                 + 2 * tb * in_dim * 4
                 + 2 * tb * cls_pad * out_itemsize
                 + 6 * tb * hid_pad * 4
                 + (4 << 20))
    vmem_limit = int(min(max(32 << 20, vmem_need), 100 << 20))

    cost = pl.CostEstimate(
        flops=2 * batch_pad * (in_dim * hid_pad + 2 * hid_pad * hid_pad
                               + hid_pad * cls_pad),
        transcendentals=batch_pad * cls_pad,
        bytes_accessed=(batch_pad * in_dim * 4          # x
                        + w_elems * 2 + b_elems * 4     # weights / biases (bf16 / f32)
                        + batch_pad * cls_pad * out_itemsize),
    )

    out_pad = pl.pallas_call(
        _mlp_kernel,
        out_shape=jax.ShapeDtypeStruct((batch_pad, cls_pad), out_dtype),
        grid_spec=pltpu.PrefetchScalarGridSpec(
            num_scalar_prefetch=0,
            grid=(num_tiles,),
            in_specs=[
                pl.BlockSpec((tb, in_dim), lambda i: (i, 0)),   # x: tiled over batch
                resident(params["w1"]), resident(params["b1"]),
                resident(params["w2"]), resident(params["b2"]),
                resident(params["w3"]), resident(params["b3"]),
                resident(params["w4"]), resident(params["b4"]),
            ],
            out_specs=pl.BlockSpec((tb, cls_pad), lambda i: (i, 0)),
        ),
        compiler_params=pltpu.CompilerParams(
            dimension_semantics=("parallel",),
            vmem_limit_bytes=vmem_limit,
        ),
        cost_estimate=cost,
    )(xp, params["w1"], params["b1"], params["w2"], params["b2"],
      params["w3"], params["b3"], params["w4"], params["b4"])

    return out_pad[:batch, :n_classes]


def init_params(key, input_dim, model_scale, n_classes=10):
    """Deterministic init mirroring torch.nn.Linear; W transposed to (in, out)."""
    dims = [(model_scale, input_dim),
            (model_scale, model_scale),
            (model_scale, model_scale),
            (n_classes, model_scale)]
    ws, bs = [], []
    for out_d, in_d in dims:
        kw, kb, key = jax.random.split(key, 3)
        bound = 1.0 / jnp.sqrt(in_d)
        w_torch_layout = jax.random.uniform(kw, (out_d, in_d), jnp.float32,
                                            -bound, bound)
        b = jax.random.uniform(kb, (1, out_d), jnp.float32, -bound, bound)
        ws.append(w_torch_layout.T)   # (in, out) so the kernel computes x @ W
        bs.append(b)
    return ws, bs


if __name__ == "__main__":
    key = jax.random.PRNGKey(0)
    batch, input_dim, model_scale = 8, 32, 64

    kx, kp, kx2 = jax.random.split(key, 3)
    x = jax.random.normal(kx, (batch, input_dim), jnp.float32)
    ws, bs = init_params(kp, input_dim, model_scale)
    (w1, w2, w3, w4), (b1, b2, b3, b4) = ws, bs

    params = prepare_params(ws, bs, n_classes=10)

    out = mlp_forward(x, params)
    out = jax.block_until_ready(out)

    # Reference matched to the kernel's bf16-operand / f32-accumulate matmuls.
    def ref_bf16(xi):
        def lin(h, w, b):
            return jnp.dot(h.astype(jnp.bfloat16), w.astype(jnp.bfloat16),
                           preferred_element_type=jnp.float32) + b
        h = jnp.maximum(lin(xi, w1, b1), 0.0)
        h = jnp.maximum(lin(h, w2, b2), 0.0)
        h = jnp.maximum(lin(h, w3, b3), 0.0)
        return jax.nn.softmax(lin(h, w4, b4), axis=1)

    # Pure-f32 reference (original torch module semantics), looser tolerance.
    def ref_f32(xi):
        h = jnp.maximum(xi @ w1 + b1, 0.0)
        h = jnp.maximum(h @ w2 + b2, 0.0)
        h = jnp.maximum(h @ w3 + b3, 0.0)
        return jax.nn.softmax(h @ w4 + b4, axis=1)

    assert out.shape == (batch, 10)
    assert jnp.allclose(out, ref_bf16(x), atol=5e-3), "mismatch vs bf16 reference"
    assert jnp.allclose(out, ref_f32(x), atol=5e-2), "mismatch vs f32 reference"
    assert jnp.allclose(jnp.sum(out, axis=1), 1.0, atol=5e-3)

    # Exercise the multi-tile (num_tiles >= 2) + row-padding path as well.
    x2 = jax.random.normal(kx2, (40, input_dim), jnp.float32)
    out2 = jax.block_until_ready(mlp_forward(x2, params))
    assert out2.shape == (40, 10)
    assert jnp.allclose(out2, ref_bf16(x2), atol=5e-3), "mismatch (multi-tile path)"
    assert jnp.allclose(jnp.sum(out2, axis=1), 1.0, atol=5e-3)

    print("KERNEL_OK")
</pallas_src>

<mosaic_0001>
module attributes {stable_mosaic.version = 11 : i64} {
  func.func @_mlp_kernel(%arg0: i32, %arg1: memref<16x32xf32, #tpu.memory_space<vmem>>, %arg2: memref<32x128xbf16, #tpu.memory_space<vmem>>, %arg3: memref<1x128xf32, #tpu.memory_space<vmem>>, %arg4: memref<128x128xbf16, #tpu.memory_space<vmem>>, %arg5: memref<1x128xf32, #tpu.memory_space<vmem>>, %arg6: memref<128x128xbf16, #tpu.memory_space<vmem>>, %arg7: memref<1x128xf32, #tpu.memory_space<vmem>>, %arg8: memref<128x128xbf16, #tpu.memory_space<vmem>>, %arg9: memref<1x128xf32, #tpu.memory_space<vmem>>, %arg10: memref<16x128xf32, #tpu.memory_space<vmem>>) attributes {dimension_semantics = [#tpu.dimension_semantics<parallel>], iteration_bounds = array<i64: 1>, scalar_prefetch = 0 : i64, scratch_operands = 0 : i64, tpu.core_type = #tpu.core_type<tc>, window_params = [{transform_indices = @transform_0, window_bounds = array<i64: 16, 32>}, {pipeline_mode = #tpu.pipeline_mode<synchronous>, transform_indices = @transform_1, window_bounds = array<i64: 32, 128>}, {pipeline_mode = #tpu.pipeline_mode<synchronous>, transform_indices = @transform_2, window_bounds = array<i64: 1, 128>}, {pipeline_mode = #tpu.pipeline_mode<synchronous>, transform_indices = @transform_3, window_bounds = array<i64: 128, 128>}, {pipeline_mode = #tpu.pipeline_mode<synchronous>, transform_indices = @transform_4, window_bounds = array<i64: 1, 128>}, {pipeline_mode = #tpu.pipeline_mode<synchronous>, transform_indices = @transform_5, window_bounds = array<i64: 128, 128>}, {pipeline_mode = #tpu.pipeline_mode<synchronous>, transform_indices = @transform_6, window_bounds = array<i64: 1, 128>}, {pipeline_mode = #tpu.pipeline_mode<synchronous>, transform_indices = @transform_7, window_bounds = array<i64: 128, 128>}, {pipeline_mode = #tpu.pipeline_mode<synchronous>, transform_indices = @transform_8, window_bounds = array<i64: 1, 128>}, {transform_indices = @transform_9, window_bounds = array<i64: 16, 128>}]} {
    %c0 = arith.constant 0 : index
    %c0_0 = arith.constant 0 : index
    %0 = vector.load %arg1[%c0, %c0_0] : memref<16x32xf32, #tpu.memory_space<vmem>>, vector<16x32xf32>
    %1 = arith.truncf %0 : vector<16x32xf32> to vector<16x32xbf16>
    %c0_1 = arith.constant 0 : index
    %c0_2 = arith.constant 0 : index
    %2 = vector.load %arg2[%c0_1, %c0_2] : memref<32x128xbf16, #tpu.memory_space<vmem>>, vector<32x128xbf16>
    %cst = arith.constant dense<0.000000e+00> : vector<16x128xf32>
    %3 = tpu.matmul %1, %2, %cst {dimension_numbers = #tpu.dot_dimension_numbers<[1], [0], [0], [1], [0, 0, 1, 1], [], []>} : vector<16x32xbf16>, vector<32x128xbf16>, vector<16x128xf32> -> vector<16x128xf32>
    %c0_3 = arith.constant 0 : index
    %c0_4 = arith.constant 0 : index
    %4 = vector.load %arg3[%c0_3, %c0_4] : memref<1x128xf32, #tpu.memory_space<vmem>>, vector<1x128xf32>
    %5 = vector.broadcast %4 : vector<1x128xf32> to vector<16x128xf32>
    %6 = arith.addf %3, %5 : vector<16x128xf32>
    %cst_5 = arith.constant 0.000000e+00 : f32
    %7 = vector.broadcast %cst_5 : f32 to vector<16x128xf32>
    %8 = arith.maximumf %6, %7 : vector<16x128xf32>
    %9 = arith.truncf %8 : vector<16x128xf32> to vector<16x128xbf16>
    %c0_6 = arith.constant 0 : index
    %c0_7 = arith.constant 0 : index
    %10 = vector.load %arg4[%c0_6, %c0_7] : memref<128x128xbf16, #tpu.memory_space<vmem>>, vector<128x128xbf16>
    %cst_8 = arith.constant dense<0.000000e+00> : vector<16x128xf32>
    %11 = tpu.matmul %9, %10, %cst_8 {dimension_numbers = #tpu.dot_dimension_numbers<[1], [0], [0], [1], [0, 0, 1, 1], [], []>} : vector<16x128xbf16>, vector<128x128xbf16>, vector<16x128xf32> -> vector<16x128xf32>
    %c0_9 = arith.constant 0 : index
    %c0_10 = arith.constant 0 : index
    %12 = vector.load %arg5[%c0_9, %c0_10] : memref<1x128xf32, #tpu.memory_space<vmem>>, vector<1x128xf32>
    %13 = vector.broadcast %12 : vector<1x128xf32> to vector<16x128xf32>
    %14 = arith.addf %11, %13 : vector<16x128xf32>
    %cst_11 = arith.constant 0.000000e+00 : f32
    %15 = vector.broadcast %cst_11 : f32 to vector<16x128xf32>
    %16 = arith.maximumf %14, %15 : vector<16x128xf32>
    %17 = arith.truncf %16 : vector<16x128xf32> to vector<16x128xbf16>
    %c0_12 = arith.constant 0 : index
    %c0_13 = arith.constant 0 : index
    %18 = vector.load %arg6[%c0_12, %c0_13] : memref<128x128xbf16, #tpu.memory_space<vmem>>, vector<128x128xbf16>
    %cst_14 = arith.constant dense<0.000000e+00> : vector<16x128xf32>
    %19 = tpu.matmul %17, %18, %cst_14 {dimension_numbers = #tpu.dot_dimension_numbers<[1], [0], [0], [1], [0, 0, 1, 1], [], []>} : vector<16x128xbf16>, vector<128x128xbf16>, vector<16x128xf32> -> vector<16x128xf32>
    %c0_15 = arith.constant 0 : index
    %c0_16 = arith.constant 0 : index
    %20 = vector.load %arg7[%c0_15, %c0_16] : memref<1x128xf32, #tpu.memory_space<vmem>>, vector<1x128xf32>
    %21 = vector.broadcast %20 : vector<1x128xf32> to vector<16x128xf32>
    %22 = arith.addf %19, %21 : vector<16x128xf32>
    %cst_17 = arith.constant 0.000000e+00 : f32
    %23 = vector.broadcast %cst_17 : f32 to vector<16x128xf32>
    %24 = arith.maximumf %22, %23 : vector<16x128xf32>
    %25 = arith.truncf %24 : vector<16x128xf32> to vector<16x128xbf16>
    %c0_18 = arith.constant 0 : index
    %c0_19 = arith.constant 0 : index
    %26 = vector.load %arg8[%c0_18, %c0_19] : memref<128x128xbf16, #tpu.memory_space<vmem>>, vector<128x128xbf16>
    %cst_20 = arith.constant dense<0.000000e+00> : vector<16x128xf32>
    %27 = tpu.matmul %25, %26, %cst_20 {dimension_numbers = #tpu.dot_dimension_numbers<[1], [0], [0], [1], [0, 0, 1, 1], [], []>} : vector<16x128xbf16>, vector<128x128xbf16>, vector<16x128xf32> -> vector<16x128xf32>
    %c0_21 = arith.constant 0 : index
    %c0_22 = arith.constant 0 : index
    %28 = vector.load %arg9[%c0_21, %c0_22] : memref<1x128xf32, #tpu.memory_space<vmem>>, vector<1x128xf32>
    %29 = vector.broadcast %28 : vector<1x128xf32> to vector<16x128xf32>
    %30 = arith.addf %27, %29 : vector<16x128xf32>
    %cst_23 = arith.constant dense<0xFF800000> : vector<16xf32>
    %31 = vector.multi_reduction <maximumf>, %30, %cst_23 [1] : vector<16x128xf32> to vector<16xf32>
    %32 = vector.shape_cast %31 : vector<16xf32> to vector<16x1xf32>
    %33 = vector.broadcast %32 : vector<16x1xf32> to vector<16x128xf32>
    %34 = arith.subf %30, %33 : vector<16x128xf32>
    %35 = math.exp %34 : vector<16x128xf32>
    %cst_24 = arith.constant dense<0.000000e+00> : vector<16xf32>
    %36 = vector.multi_reduction <add>, %35, %cst_24 [1] : vector<16x128xf32> to vector<16xf32>
    %37 = vector.shape_cast %36 : vector<16xf32> to vector<16x1xf32>
    %38 = tpu.reciprocal %37 {approx = true} : vector<16x1xf32> -> vector<16x1xf32>
    %39 = vector.broadcast %38 : vector<16x1xf32> to vector<16x128xf32>
    %40 = arith.mulf %35, %39 : vector<16x128xf32>
    %c0_25 = arith.constant 0 : index
    %c0_26 = arith.constant 0 : index
    %41 = vector.load %arg10[%c0_25, %c0_26] : memref<16x128xf32, #tpu.memory_space<vmem>>, vector<16x128xf32>
    tpu.vector_store %arg10[%c0_25, %c0_26], %40 {strides = array<i32>} : memref<16x128xf32, #tpu.memory_space<vmem>>, vector<16x128xf32>,
    return
  }
  func.func @transform_0(%arg0: i32) -> (i32, i32) {
    %c0_i32 = arith.constant 0 : i32
    %c0_i32_0 = arith.constant 0 : i32
    return %arg0, %c0_i32 : i32, i32
  }
  func.func @transform_1(%arg0: i32) -> (i32, i32) {
    %c0_i32 = arith.constant 0 : i32
    %c0_i32_0 = arith.constant 0 : i32
    %c0_i32_1 = arith.constant 0 : i32
    return %c0_i32, %c0_i32_0 : i32, i32
  }
  func.func @transform_2(%arg0: i32) -> (i32, i32) {
    %c0_i32 = arith.constant 0 : i32
    %c0_i32_0 = arith.constant 0 : i32
    %c0_i32_1 = arith.constant 0 : i32
    return %c0_i32, %c0_i32_0 : i32, i32
  }
  func.func @transform_3(%arg0: i32) -> (i32, i32) {
    %c0_i32 = arith.constant 0 : i32
    %c0_i32_0 = arith.constant 0 : i32
    %c0_i32_1 = arith.constant 0 : i32
    return %c0_i32, %c0_i32_0 : i32, i32
  }
  func.func @transform_4(%arg0: i32) -> (i32, i32) {
    %c0_i32 = arith.constant 0 : i32
    %c0_i32_0 = arith.constant 0 : i32
    %c0_i32_1 = arith.constant 0 : i32
    return %c0_i32, %c0_i32_0 : i32, i32
  }
  func.func @transform_5(%arg0: i32) -> (i32, i32) {
    %c0_i32 = arith.constant 0 : i32
    %c0_i32_0 = arith.constant 0 : i32
    %c0_i32_1 = arith.constant 0 : i32
    return %c0_i32, %c0_i32_0 : i32, i32
  }
  func.func @transform_6(%arg0: i32) -> (i32, i32) {
    %c0_i32 = arith.constant 0 : i32
    %c0_i32_0 = arith.constant 0 : i32
    %c0_i32_1 = arith.constant 0 : i32
    return %c0_i32, %c0_i32_0 : i32, i32
  }
  func.func @transform_7(%arg0: i32) -> (i32, i32) {
    %c0_i32 = arith.constant 0 : i32
    %c0_i32_0 = arith.constant 0 : i32
    %c0_i32_1 = arith.constant 0 : i32
    return %c0_i32, %c0_i32_0 : i32, i32
  }
  func.func @transform_8(%arg0: i32) -> (i32, i32) {
    %c0_i32 = arith.constant 0 : i32
    %c0_i32_0 = arith.constant 0 : i32
    %c0_i32_1 = arith.constant 0 : i32
    return %c0_i32, %c0_i32_0 : i32, i32
  }
  func.func @transform_9(%arg0: i32) -> (i32, i32) {
    %c0_i32 = arith.constant 0 : i32
    %c0_i32_0 = arith.constant 0 : i32
    return %arg0, %c0_i32 : i32, i32
  }
}

</mosaic_0001>

<llo_original>
// kernel: mlp_forward.1
$region0: #{mlp_forward.1}
  #allocation0 [shape = 'u32[]', space=smem, size = 0x4, offset = 0x4, fixed_abs, tag = 'smem constant byte address 0x4 - core index']
  #allocation1 [shape = 'u32[144,128]{1,0:T(1,128)}', space=vmem, size = 0x12000, scoped, tag = 'internal scratch']
  %s0 = inlined_call_operand.vmem [shape: f32[16,32], index: 0, kind: input, shape index: {}]
  %s1 = inlined_call_operand.vmem [shape: bf16[32,128], index: 1, kind: input, shape index: {}]
  %s2 = inlined_call_operand.vmem [shape: f32[1,128], index: 2, kind: input, shape index: {}]
  %s3 = inlined_call_operand.hbm [shape: bf16[128,128], index: 3, kind: input, shape index: {}]
  %s4 = inlined_call_operand.vmem [shape: f32[1,128], index: 4, kind: input, shape index: {}]
  %s5 = inlined_call_operand.hbm [shape: bf16[128,128], index: 5, kind: input, shape index: {}]
  %s6 = inlined_call_operand.vmem [shape: f32[1,128], index: 6, kind: input, shape index: {}]
  %s7 = inlined_call_operand.hbm [shape: bf16[128,128], index: 7, kind: input, shape index: {}]
  %s8 = inlined_call_operand.vmem [shape: f32[1,128], index: 8, kind: input, shape index: {}]
  %s9 = inlined_call_operand.vmem [shape: f32[16,128], index: 9, kind: output, shape index: {}]
  %s10 = sld [smem:[#allocation0]]
  $region58: #{mlp_forward.1} parent=0
    _
  %s12 = ssub.s32 1, %s10
  %s13 = scalar_select 0, %s12, %s10
  $region1: #{mlp_forward.1} parent=0
    #allocation2 [shape = 'u8[32768]{0}', space=vmem, size = 0x8000, scoped, tag = 'input window, operand 3, single buffered']
    #allocation3 [shape = 's32[1]{0}', space=sflag, size = 0x4, scoped, tag = 'scoped memory for mlp_forward.1']
    #allocation4 [shape = 'u8[32768]{0}', space=vmem, size = 0x8000, scoped, tag = 'input window, operand 5, single buffered']
    #allocation5 [shape = 's32[1]{0}', space=sflag, size = 0x4, scoped, tag = 'scoped memory for mlp_forward.1']
    #allocation6 [shape = 'u8[32768]{0}', space=vmem, size = 0x8000, scoped, tag = 'input window, operand 7, single buffered']
    %14 = vsyncpa [#allocation3], 0
    %15 = vsyncpa [#allocation5], 0
    // Predicated region
    $region2: #{mlp_forward.1} parent=1 // pred_check
      _
    $region3: #{mlp_forward.1} parent=1 // pred_check_branch
      %17 = sbr.rel (0) target = $region5
    $region4: #{mlp_forward.1} parent=1 // pred_region
      _
    $region5: #{mlp_forward.1} parent=1 // pred_fallthru
      _
    // Predicated region
    $region6: #{mlp_forward.1} parent=1 // pred_check
      _
    $region7: #{mlp_forward.1} parent=1 // pred_check_branch
      %19 = sbr.rel (0) target = $region9
    $region8: #{mlp_forward.1} parent=1 // pred_region
      _
    $region9: #{mlp_forward.1} parent=1 // pred_fallthru
      _
    // Predicated region
    $region10: #{mlp_forward.1} parent=1 // pred_check
      _
    $region11: #{mlp_forward.1} parent=1 // pred_check_branch
      %21 = sbr.rel (0) target = $region13
    $region12: #{mlp_forward.1} parent=1 // pred_region
      _
    $region13: #{mlp_forward.1} parent=1 // pred_fallthru
      _
    // Predicated region
    $region14: #{mlp_forward.1} parent=1 // pred_check
      _
    $region15: #{mlp_forward.1} parent=1 // pred_check_branch
      %23 = sbr.rel (0) target = $region17
    $region16: #{mlp_forward.1} parent=1 // pred_region
      %s25 = ssub.s32 1024, 1024
      %26 = vsyncadd [#allocation3], %s25
      %s27 = sshll.u32 [#allocation2], 4
      %s28 = int_to_ptr.vmem [resolvable:$true] %s27
      %33 = dma.hbm_to_vmem [thread:$0]  %s3, 1024, %s28, [#allocation3], 64, 64, 4
    $region17: #{mlp_forward.1} parent=1 // pred_fallthru
      _
    // Predicated region
    $region18: #{mlp_forward.1} parent=1 // pred_check
      _
    $region19: #{mlp_forward.1} parent=1 // pred_check_branch
      %35 = sbr.rel (0) target = $region21
    $region20: #{mlp_forward.1} parent=1 // pred_region
      _
    $region21: #{mlp_forward.1} parent=1 // pred_fallthru
      _
    // Predicated region
    $region22: #{mlp_forward.1} parent=1 // pred_check
      _
    $region23: #{mlp_forward.1} parent=1 // pred_check_branch
      %37 = sbr.rel (0) target = $region25
    $region24: #{mlp_forward.1} parent=1 // pred_region
      %s39 = ssub.s32 1024, 1024
      %40 = vsyncadd [#allocation5], %s39
      %s41 = sshll.u32 [#allocation4], 4
      %s42 = int_to_ptr.vmem [resolvable:$true] %s41
      %47 = dma.hbm_to_vmem [thread:$0]  %s5, 1024, %s42, [#allocation5], 64, 64, 4
    $region25: #{mlp_forward.1} parent=1 // pred_fallthru
      _
    // Predicated region
    $region26: #{mlp_forward.1} parent=1 // pred_check
      _
    $region27: #{mlp_forward.1} parent=1 // pred_check_branch
      %49 = sbr.rel (0) target = $region29
    $region28: #{mlp_forward.1} parent=1 // pred_region
      _
    $region29: #{mlp_forward.1} parent=1 // pred_fallthru
      _
    // Predicated region
    $region30: #{mlp_forward.1} parent=1 // pred_check
      _
    $region31: #{mlp_forward.1} parent=1 // pred_check_branch
      %51 = sbr.rel (0) target = $region33
    $region32: #{mlp_forward.1} parent=1 // pred_region
      %s53 = ssub.s32 1024, 1024
      %54 = vsyncadd [#allocation5], %s53
      %s55 = sshll.u32 [#allocation6], 4
      %s56 = int_to_ptr.vmem [resolvable:$true] %s55
      %61 = dma.hbm_to_vmem [thread:$0]  %s7, 1024, %s56, [#allocation5], 64, 64, 4
    $region33: #{mlp_forward.1} parent=1 // pred_fallthru
      _
    // Predicated region
    $region34: #{mlp_forward.1} parent=1 // pred_check
      _
    $region35: #{mlp_forward.1} parent=1 // pred_check_branch
      %63 = sbr.rel (0) target = $region37
    $region36: #{mlp_forward.1} parent=1 // pred_region
      _
    $region37: #{mlp_forward.1} parent=1 // pred_fallthru
      _
    // Predicated region
    $region38: #{mlp_forward.1} parent=1 // pred_check
      _
    $region39: #{mlp_forward.1} parent=1 // pred_check_branch
      %65 = sbr.rel (0) target = $region41
    $region40: #{mlp_forward.1} parent=1 // pred_region
      %66 = dma.done [#allocation3], 1024
    $region41: #{mlp_forward.1} parent=1 // pred_fallthru
      _
    // Predicated region
    $region42: #{mlp_forward.1} parent=1 // pred_check
      _
    $region43: #{mlp_forward.1} parent=1 // pred_check_branch
      %68 = sbr.rel (0) target = $region45
    $region44: #{mlp_forward.1} parent=1 // pred_region
      %69 = dma.done [#allocation5], 1024
    $region45: #{mlp_forward.1} parent=1 // pred_fallthru
      _
    // Predicated region
    $region46: #{mlp_forward.1} parent=1 // pred_check
      _
    $region47: #{mlp_forward.1} parent=1 // pred_check_branch
      %71 = sbr.rel (0) target = $region49
    $region48: #{mlp_forward.1} parent=1 // pred_region
      %72 = dma.done [#allocation5], 1024
    $region49: #{mlp_forward.1} parent=1 // pred_fallthru
      _
    %v74 = vld [vmem:[%s0] sm:$0xff]
    %v75 = vld [vmem:[%s0 + $0x8] sm:$0xff]
    %v76 = vpack.c.bf16 %v75, %v74
    %v77 = vld [vmem:[%s1] sm:$0xf]
    %v78 = vld [vmem:[%s1 + $0x4] sm:$0xf]
    %v79 = vld [vmem:[%s1 + $0x8] sm:$0xf]
    %v80 = vld [vmem:[%s1 + $0xc] sm:$0xf]
    %v81 = vld [vmem:[%s2] sm:$0x1]
    %v83 = vlaneseq
    %v84 = vshrl.u32 %v83, 7
    %v85 = vsub.s32 0, %v84
    %v86 = vrot.slane %v81, %v85
    %v92 = vunpack.c.l.b16 %v77
    %v93 = vunpack.c.l.b16 %v78
    %v94 = vunpack.c.l.b16 %v79
    %v95 = vunpack.c.l.b16 %v80
    %v96 = vpack.c.b16 %v93, %v92
    %v97 = vpack.c.b16 %v95, %v94
    %vm100 = vcmask 261120
    %v102 = vsel %vm100, %v76, 0
    %104 = vmatprep.subr.bf16.mxu0 0
    %105 = vmatpush1.bf16.msra.mxu0 0
    %106 = vmatprep.subr.bf16.mxu0 0
    %107 = vmatpush1.bf16.msra.mxu0 0
    %108 = vmatprep.subr.bf16.mxu0 0
    %109 = vmatpush1.bf16.msra.mxu0 0
    %110 = vmatprep.subr.bf16.mxu0 0
    %111 = vmatpush1.bf16.msra.mxu0 0
    %112 = vmatprep.subr.bf16.mxu0 0
    %113 = vmatpush1.bf16.msra.mxu0 0
    %114 = vmatprep.subr.bf16.mxu0 0
    %115 = vmatpush1.bf16.msra.mxu0 0
    %116 = vmatprep.subr.bf16.mxu0 0
    %117 = vmatpush1.bf16.msra.mxu0 %v97
    %118 = vmatprep.subr.bf16.mxu0 0
    %119 = vmatpush1.bf16.msra.mxu0 %v96
    %120 = vmatprep.subr.bf16.mxu0 0
    %121 = vmatpush2.bf16.msra.mxu0 0
    %122 = vmatprep.subr.bf16.mxu0 0
    %123 = vmatpush2.bf16.msra.mxu0 0
    %124 = vmatprep.subr.bf16.mxu0 0
    %125 = vmatpush2.bf16.msra.mxu0 0
    %126 = vmatprep.subr.bf16.mxu0 0
    %127 = vmatpush2.bf16.msra.mxu0 0
    %128 = vmatprep.subr.bf16.mxu0 0
    %129 = vmatpush2.bf16.msra.mxu0 0
    %130 = vmatprep.subr.bf16.mxu0 0
    %131 = vmatpush2.bf16.msra.mxu0 0
    %132 = vmatprep.subr.bf16.mxu0 0
    %133 = vmatpush2.bf16.msra.mxu0 0
    %134 = vmatprep.subr.bf16.mxu0 0
    %135 = vmatpush2.bf16.msra.mxu0 0
    %136 = vmatprep.mubr.bf16.mxu0 0
    %137 = vmatmul.mubr.bf16.gmra.mxu0 %v102
    %v138 = vpop.f32.mrf.mxu0
    %v139 = vadd.f32 %v86, %v138
    %v140 = vpop.f32.mrf.mxu0
    %v141 = vpop.f32.mrf.mxu0
    %v142 = vadd.f32 %v86, %v141
    %v143 = vpop.f32.mrf.mxu0
    %144 = vdwg.mxu0
    %v145 = vmax.f32 %v139, 0.0
    %v146 = vmax.f32 %v142, 0.0
    %v147 = vpack.c.bf16 %v146, %v145
    %v148 = vld [vmem:[#allocation2] sm:$0xf]
    %v149 = vld [vmem:[#allocation2 + $0x4] sm:$0xf]
    %v150 = vld [vmem:[#allocation2 + $0x8] sm:$0xf]
    %v151 = vld [vmem:[#allocation2 + $0xc] sm:$0xf]
    %v152 = vld [vmem:[#allocation2 + $0x10] sm:$0xf]
    %v153 = vld [vmem:[#allocation2 + $0x14] sm:$0xf]
    %v154 = vld [vmem:[#allocation2 + $0x18] sm:$0xf]
    %v155 = vld [vmem:[#allocation2 + $0x1c] sm:$0xf]
    %v156 = vld [vmem:[#allocation2 + $0x20] sm:$0xf]
    %v157 = vld [vmem:[#allocation2 + $0x24] sm:$0xf]
    %v158 = vld [vmem:[#allocation2 + $0x28] sm:$0xf]
    %v159 = vld [vmem:[#allocation2 + $0x2c] sm:$0xf]
    %v160 = vld [vmem:[#allocation2 + $0x30] sm:$0xf]
    %v161 = vld [vmem:[#allocation2 + $0x34] sm:$0xf]
    %v162 = vld [vmem:[#allocation2 + $0x38] sm:$0xf]
    %v163 = vld [vmem:[#allocation2 + $0x3c] sm:$0xf]
    %v164 = vld [vmem:[%s4] sm:$0x1]
    %v166 = vlaneseq
    %v167 = vshrl.u32 %v166, 7
    %v168 = vsub.s32 0, %v167
    %v169 = vrot.slane %v164, %v168
    %v187 = vunpack.c.l.b16 %v148
    %v188 = vunpack.c.l.b16 %v149
    %v189 = vunpack.c.l.b16 %v150
    %v190 = vunpack.c.l.b16 %v151
    %v191 = vunpack.c.l.b16 %v152
    %v192 = vunpack.c.l.b16 %v153
    %v193 = vunpack.c.l.b16 %v154
    %v194 = vunpack.c.l.b16 %v155
    %v195 = vunpack.c.l.b16 %v156
    %v196 = vunpack.c.l.b16 %v157
    %v197 = vunpack.c.l.b16 %v158
    %v198 = vunpack.c.l.b16 %v159
    %v199 = vunpack.c.l.b16 %v160
    %v200 = vunpack.c.l.b16 %v161
    %v201 = vunpack.c.l.b16 %v162
    %v202 = vunpack.c.l.b16 %v163
    %v203 = vpack.c.b16 %v188, %v187
    %v204 = vpack.c.b16 %v190, %v189
    %v205 = vpack.c.b16 %v192, %v191
    %v206 = vpack.c.b16 %v194, %v193
    %v207 = vpack.c.b16 %v196, %v195
    %v208 = vpack.c.b16 %v198, %v197
    %v209 = vpack.c.b16 %v200, %v199
    %v210 = vpack.c.b16 %v202, %v201
    %219 = vmatprep.subr.bf16.mxu0 0
    %220 = vmatpush1.bf16.msra.mxu0 %v210
    %221 = vmatprep.subr.bf16.mxu0 0
    %222 = vmatpush1.bf16.msra.mxu0 %v209
    %223 = vmatprep.subr.bf16.mxu0 0
    %224 = vmatpush1.bf16.msra.mxu0 %v208
    %225 = vmatprep.subr.bf16.mxu0 0
    %226 = vmatpush1.bf16.msra.mxu0 %v207
    %227 = vmatprep.subr.bf16.mxu0 0
    %228 = vmatpush1.bf16.msra.mxu0 %v206
    %229 = vmatprep.subr.bf16.mxu0 0
    %230 = vmatpush1.bf16.msra.mxu0 %v205
    %231 = vmatprep.subr.bf16.mxu0 0
    %232 = vmatpush1.bf16.msra.mxu0 %v204
    %233 = vmatprep.subr.bf16.mxu0 0
    %234 = vmatpush1.bf16.msra.mxu0 %v203
    %235 = vmatprep.subr.bf16.mxu0 0
    %236 = vmatpush2.bf16.msra.mxu0 0
    %237 = vmatprep.subr.bf16.mxu0 0
    %238 = vmatpush2.bf16.msra.mxu0 0
    %239 = vmatprep.subr.bf16.mxu0 0
    %240 = vmatpush2.bf16.msra.mxu0 0
    %241 = vmatprep.subr.bf16.mxu0 0
    %242 = vmatpush2.bf16.msra.mxu0 0
    %243 = vmatprep.subr.bf16.mxu0 0
    %244 = vmatpush2.bf16.msra.mxu0 0
    %245 = vmatprep.subr.bf16.mxu0 0
    %246 = vmatpush2.bf16.msra.mxu0 0
    %247 = vmatprep.subr.bf16.mxu0 0
    %248 = vmatpush2.bf16.msra.mxu0 0
    %249 = vmatprep.subr.bf16.mxu0 0
    %250 = vmatpush2.bf16.msra.mxu0 0
    %251 = vmatprep.mubr.bf16.mxu0 0
    %252 = vmatmul.mubr.bf16.gmra.mxu0 %v147
    %v253 = vpop.f32.mrf.mxu0
    %v254 = vadd.f32 %v169, %v253
    %v255 = vpop.f32.mrf.mxu0
    %v256 = vpop.f32.mrf.mxu0
    %v257 = vadd.f32 %v169, %v256
    %v258 = vpop.f32.mrf.mxu0
    %259 = vdwg.mxu0
    %v260 = vmax.f32 %v254, 0.0
    %v261 = vmax.f32 %v257, 0.0
    %v262 = vpack.c.bf16 %v261, %v260
    %v263 = vld [vmem:[#allocation4] sm:$0xf]
    %v264 = vld [vmem:[#allocation4 + $0x4] sm:$0xf]
    %v265 = vld [vmem:[#allocation4 + $0x8] sm:$0xf]
    %v266 = vld [vmem:[#allocation4 + $0xc] sm:$0xf]
    %v267 = vld [vmem:[#allocation4 + $0x10] sm:$0xf]
    %v268 = vld [vmem:[#allocation4 + $0x14] sm:$0xf]
    %v269 = vld [vmem:[#allocation4 + $0x18] sm:$0xf]
    %v270 = vld [vmem:[#allocation4 + $0x1c] sm:$0xf]
    %v271 = vld [vmem:[#allocation4 + $0x20] sm:$0xf]
    %v272 = vld [vmem:[#allocation4 + $0x24] sm:$0xf]
    %v273 = vld [vmem:[#allocation4 + $0x28] sm:$0xf]
    %v274 = vld [vmem:[#allocation4 + $0x2c] sm:$0xf]
    %v275 = vld [vmem:[#allocation4 + $0x30] sm:$0xf]
    %v276 = vld [vmem:[#allocation4 + $0x34] sm:$0xf]
    %v277 = vld [vmem:[#allocation4 + $0x38] sm:$0xf]
    %v278 = vld [vmem:[#allocation4 + $0x3c] sm:$0xf]
    %v279 = vld [vmem:[%s6] sm:$0x1]
    %v281 = vlaneseq
    %v282 = vshrl.u32 %v281, 7
    %v283 = vsub.s32 0, %v282
    %v284 = vrot.slane %v279, %v283
    %v302 = vunpack.c.l.b16 %v263
    %v303 = vunpack.c.l.b16 %v264
    %v304 = vunpack.c.l.b16 %v265
    %v305 = vunpack.c.l.b16 %v266
    %v306 = vunpack.c.l.b16 %v267
    %v307 = vunpack.c.l.b16 %v268
    %v308 = vunpack.c.l.b16 %v269
    %v309 = vunpack.c.l.b16 %v270
    %v310 = vunpack.c.l.b16 %v271
    %v311 = vunpack.c.l.b16 %v272
    %v312 = vunpack.c.l.b16 %v273
    %v313 = vunpack.c.l.b16 %v274
    %v314 = vunpack.c.l.b16 %v275
    %v315 = vunpack.c.l.b16 %v276
    %v316 = vunpack.c.l.b16 %v277
    %v317 = vunpack.c.l.b16 %v278
    %v318 = vpack.c.b16 %v303, %v302
    %v319 = vpack.c.b16 %v305, %v304
    %v320 = vpack.c.b16 %v307, %v306
    %v321 = vpack.c.b16 %v309, %v308
    %v322 = vpack.c.b16 %v311, %v310
    %v323 = vpack.c.b16 %v313, %v312
    %v324 = vpack.c.b16 %v315, %v314
    %v325 = vpack.c.b16 %v317, %v316
    %334 = vmatprep.subr.bf16.mxu0 0
    %335 = vmatpush1.bf16.msra.mxu0 %v325
    %336 = vmatprep.subr.bf16.mxu0 0
    %337 = vmatpush1.bf16.msra.mxu0 %v324
    %338 = vmatprep.subr.bf16.mxu0 0
    %339 = vmatpush1.bf16.msra.mxu0 %v323
    %340 = vmatprep.subr.bf16.mxu0 0
    %341 = vmatpush1.bf16.msra.mxu0 %v322
    %342 = vmatprep.subr.bf16.mxu0 0
    %343 = vmatpush1.bf16.msra.mxu0 %v321
    %344 = vmatprep.subr.bf16.mxu0 0
    %345 = vmatpush1.bf16.msra.mxu0 %v320
    %346 = vmatprep.subr.bf16.mxu0 0
    %347 = vmatpush1.bf16.msra.mxu0 %v319
    %348 = vmatprep.subr.bf16.mxu0 0
    %349 = vmatpush1.bf16.msra.mxu0 %v318
    %350 = vmatprep.subr.bf16.mxu0 0
    %351 = vmatpush2.bf16.msra.mxu0 0
    %352 = vmatprep.subr.bf16.mxu0 0
    %353 = vmatpush2.bf16.msra.mxu0 0
    %354 = vmatprep.subr.bf16.mxu0 0
    %355 = vmatpush2.bf16.msra.mxu0 0
    %356 = vmatprep.subr.bf16.mxu0 0
    %357 = vmatpush2.bf16.msra.mxu0 0
    %358 = vmatprep.subr.bf16.mxu0 0
    %359 = vmatpush2.bf16.msra.mxu0 0
    %360 = vmatprep.subr.bf16.mxu0 0
    %361 = vmatpush2.bf16.msra.mxu0 0
    %362 = vmatprep.subr.bf16.mxu0 0
    %363 = vmatpush2.bf16.msra.mxu0 0
    %364 = vmatprep.subr.bf16.mxu0 0
    %365 = vmatpush2.bf16.msra.mxu0 0
    %366 = vmatprep.mubr.bf16.mxu0 0
    %367 = vmatmul.mubr.bf16.gmra.mxu0 %v262
    %v368 = vpop.f32.mrf.mxu0
    %v369 = vadd.f32 %v284, %v368
    %v370 = vpop.f32.mrf.mxu0
    %v371 = vpop.f32.mrf.mxu0
    %v372 = vadd.f32 %v284, %v371
    %v373 = vpop.f32.mrf.mxu0
    %374 = vdwg.mxu0
    %v375 = vmax.f32 %v369, 0.0
    %v376 = vmax.f32 %v372, 0.0
    %v377 = vpack.c.bf16 %v376, %v375
    %v378 = vld [vmem:[#allocation6] sm:$0xf]
    %v379 = vld [vmem:[#allocation6 + $0x4] sm:$0xf]
    %v380 = vld [vmem:[#allocation6 + $0x8] sm:$0xf]
    %v381 = vld [vmem:[#allocation6 + $0xc] sm:$0xf]
    %v382 = vld [vmem:[#allocation6 + $0x10] sm:$0xf]
    %v383 = vld [vmem:[#allocation6 + $0x14] sm:$0xf]
    %v384 = vld [vmem:[#allocation6 + $0x18] sm:$0xf]
    %v385 = vld [vmem:[#allocation6 + $0x1c] sm:$0xf]
    %v386 = vld [vmem:[#allocation6 + $0x20] sm:$0xf]
    %v387 = vld [vmem:[#allocation6 + $0x24] sm:$0xf]
    %v388 = vld [vmem:[#allocation6 + $0x28] sm:$0xf]
    %v389 = vld [vmem:[#allocation6 + $0x2c] sm:$0xf]
    %v390 = vld [vmem:[#allocation6 + $0x30] sm:$0xf]
    %v391 = vld [vmem:[#allocation6 + $0x34] sm:$0xf]
    %v392 = vld [vmem:[#allocation6 + $0x38] sm:$0xf]
    %v393 = vld [vmem:[#allocation6 + $0x3c] sm:$0xf]
    %v394 = vld [vmem:[%s8] sm:$0x1]
    %v396 = vlaneseq
    %v397 = vshrl.u32 %v396, 7
    %v398 = vsub.s32 0, %v397
    %v399 = vrot.slane %v394, %v398
    %v417 = vunpack.c.l.b16 %v378
    %v418 = vunpack.c.l.b16 %v379
    %v419 = vunpack.c.l.b16 %v380
    %v420 = vunpack.c.l.b16 %v381
    %v421 = vunpack.c.l.b16 %v382
    %v422 = vunpack.c.l.b16 %v383
    %v423 = vunpack.c.l.b16 %v384
    %v424 = vunpack.c.l.b16 %v385
    %v425 = vunpack.c.l.b16 %v386
    %v426 = vunpack.c.l.b16 %v387
    %v427 = vunpack.c.l.b16 %v388
    %v428 = vunpack.c.l.b16 %v389
    %v429 = vunpack.c.l.b16 %v390
    %v430 = vunpack.c.l.b16 %v391
    %v431 = vunpack.c.l.b16 %v392
    %v432 = vunpack.c.l.b16 %v393
    %v433 = vpack.c.b16 %v418, %v417
    %v434 = vpack.c.b16 %v420, %v419
    %v435 = vpack.c.b16 %v422, %v421
    %v436 = vpack.c.b16 %v424, %v423
    %v437 = vpack.c.b16 %v426, %v425
    %v438 = vpack.c.b16 %v428, %v427
    %v439 = vpack.c.b16 %v430, %v429
    %v440 = vpack.c.b16 %v432, %v431
    %449 = vmatprep.subr.bf16.mxu0 0
    %450 = vmatpush1.bf16.msra.mxu0 %v440
    %451 = vmatprep.subr.bf16.mxu0 0
    %452 = vmatpush1.bf16.msra.mxu0 %v439
    %453 = vmatprep.subr.bf16.mxu0 0
    %454 = vmatpush1.bf16.msra.mxu0 %v438
    %455 = vmatprep.subr.bf16.mxu0 0
    %456 = vmatpush1.bf16.msra.mxu0 %v437
    %457 = vmatprep.subr.bf16.mxu0 0
    %458 = vmatpush1.bf16.msra.mxu0 %v436
    %459 = vmatprep.subr.bf16.mxu0 0
    %460 = vmatpush1.bf16.msra.mxu0 %v435
    %461 = vmatprep.subr.bf16.mxu0 0
    %462 = vmatpush1.bf16.msra.mxu0 %v434
    %463 = vmatprep.subr.bf16.mxu0 0
    %464 = vmatpush1.bf16.msra.mxu0 %v433
    %465 = vmatprep.subr.bf16.mxu0 0
    %466 = vmatpush2.bf16.msra.mxu0 0
    %467 = vmatprep.subr.bf16.mxu0 0
    %468 = vmatpush2.bf16.msra.mxu0 0
    %469 = vmatprep.subr.bf16.mxu0 0
    %470 = vmatpush2.bf16.msra.mxu0 0
    %471 = vmatprep.subr.bf16.mxu0 0
    %472 = vmatpush2.bf16.msra.mxu0 0
    %473 = vmatprep.subr.bf16.mxu0 0
    %474 = vmatpush2.bf16.msra.mxu0 0
    %475 = vmatprep.subr.bf16.mxu0 0
    %476 = vmatpush2.bf16.msra.mxu0 0
    %477 = vmatprep.subr.bf16.mxu0 0
    %478 = vmatpush2.bf16.msra.mxu0 0
    %479 = vmatprep.subr.bf16.mxu0 0
    %480 = vmatpush2.bf16.msra.mxu0 0
    %481 = vmatprep.mubr.bf16.mxu0 0
    %482 = vmatmul.mubr.bf16.gmra.mxu0 %v377
    %v483 = vpop.f32.mrf.mxu0
    %v484 = vadd.f32 %v399, %v483
    %v485 = vpop.f32.mrf.mxu0
    %v486 = vpop.f32.mrf.mxu0
    %v487 = vadd.f32 %v399, %v486
    %v488 = vpop.f32.mrf.mxu0
    %489 = vdwg.mxu0
    %490 = vmax.xlane.f32.xlu0 %v484
    %v491 = vpop.xlane.xlu0 %490
    %492 = vmax.xlane.f32.xlu0 %v487
    %v493 = vpop.xlane.xlu0 %492
    %v494 = vsub.f32 %v484, %v491
    %v495 = vsub.f32 %v487, %v493
    %v496 = vmul.f32 %v494, 1.442695
    %v497 = vpow.pop %v496
    %v498 = vmul.f32 %v495, 1.442695
    %v499 = vpow.pop %v498
    %500 = vadd.xlane.f32.xlu0 %v497
    %v501 = vpop.xlane.xlu0 %500
    %502 = vadd.xlane.f32.xlu0 %v499
    %v503 = vpop.xlane.xlu0 %502
    %v504 = vrcp.pop %v501
    %v505 = vrcp.pop %v503
    %v506 = vmul.f32 %v497, %v504
    %v507 = vmul.f32 %v499, %v505
    %508 = vst [vmem:[%s9] sm:$0xff] %v506
    %509 = vst [vmem:[%s9 + $0x8] sm:$0xff] %v507
    // Predicated region
    $region50: #{mlp_forward.1} parent=1 // pred_check
      _
    $region51: #{mlp_forward.1} parent=1 // pred_check_branch
      %511 = sbr.rel (0) target = $region53
    $region52: #{mlp_forward.1} parent=1 // pred_region
      _
    $region53: #{mlp_forward.1} parent=1 // pred_fallthru
      _
    // Predicated region
    $region54: #{mlp_forward.1} parent=1 // pred_check
      _
    $region55: #{mlp_forward.1} parent=1 // pred_check_branch
      %513 = sbr.rel (0) target = $region57
    $region56: #{mlp_forward.1} parent=1 // pred_region
      _
    $region57: #{mlp_forward.1} parent=1 // pred_fallthru
      _
    %514 = vsyncpa [#allocation3], 1
    %515 = vsyncpa [#allocation5], 1

</llo_original>
